<compile_context>
chip_gen: v5e
topology: v5e:2x2
jax: 0.10.0
libtpu: 0.0.40
codegen_flags: <defaults>
</compile_context>

<pallas_src>
import jax
import jax.numpy as jnp
from jax import lax
from jax.experimental import pallas as pl
from jax.experimental.pallas import tpu as pltpu


def _round_up(x, m):
    return (x + m - 1) // m * m


# ------------------------- tiled matmul + bias kernel -------------------------
# Used for the hoisted 3x3 attention conv expressed as im2col (bf16 in, f32 accumulate).

def _matmul_bias_kernel(x_ref, w_ref, b_ref, o_ref):
    o_ref[...] = (
        jnp.dot(x_ref[...], w_ref[...], preferred_element_type=jnp.float32)
        + b_ref[...]
    )


def matmul_bias(x, w, b, *, row_tile=256):
    """X @ W + b, tiled along rows. row_tile=256 keeps double-buffered input tiles inside
    v7x's smaller scoped-VMEM budget even when K = 9*Cin is large."""
    M, Kdim = x.shape
    N = w.shape[1]
    tm = M if M <= row_tile else row_tile
    grid = (pl.cdiv(M, tm),)
    return pl.pallas_call(
        _matmul_bias_kernel,
        out_shape=jax.ShapeDtypeStruct((M, N), jnp.float32),
        grid_spec=pltpu.PrefetchScalarGridSpec(
            num_scalar_prefetch=0,
            grid=grid,
            in_specs=[
                pl.BlockSpec((tm, Kdim), lambda i: (i, 0)),
                pl.BlockSpec((Kdim, N), lambda i: (0, 0)),
                pl.BlockSpec((1, N), lambda i: (0, 0)),
            ],
            out_specs=pl.BlockSpec((tm, N), lambda i: (i, 0)),
        ),
        compiler_params=pltpu.CompilerParams(
            dimension_semantics=("parallel",)),
    )(x, w, b.reshape(1, N))


def conv3x3_same(x_nhwc, w_hwio, b):
    """3x3 'same' conv: im2col is layout glue; the GEMM runs in Pallas with bf16 inputs and
    f32 accumulation (~2x MXU throughput vs f32 on v6e/v7x)."""
    B, H, W, Cin = x_nhwc.shape
    Cout = w_hwio.shape[-1]
    xp = jnp.pad(x_nhwc, ((0, 0), (1, 1), (1, 1), (0, 0)))
    parts = [xp[:, kh:kh + H, kw:kw + W, :] for kh in range(3) for kw in range(3)]
    patches = jnp.concatenate(parts, axis=-1).reshape(B * H * W, 9 * Cin)
    w_mat = w_hwio.reshape(9 * Cin, Cout)
    out = matmul_bias(patches.astype(jnp.bfloat16), w_mat.astype(jnp.bfloat16), b)
    return out.reshape(B, H, W, Cout)


# ------------------------- decoder wrapper + sequential kernel -------------------------

def decoder_forward(params, fmap_nchw, h0, c0, target, max_length):
    B, C, H, W = fmap_nchw.shape
    S = H * W
    T = max_length + 1
    E = params["embedding"].shape[1]
    D = h0.shape[-1]
    A = params["wel"].shape[1]
    K = params["bfc"].shape[1]

    S_pad = _round_up(S, 128)            # lane-dense attention / mask stores
    Kout = _round_up(K + C, 128)         # lanes [:K] = logits, lanes [Kout-C:] = glimpse

    fmap_nhwc = jnp.transpose(fmap_nchw, (0, 2, 3, 1))
    fmap_bsc = fmap_nhwc.reshape(B, S, C)

    # hidden-state-independent 3x3 conv, hoisted out of the time loop.
    # e = tanh(conv(fmap) + conv_b + h2 @ Wel + bel)  ->  fold bel into the conv bias.
    efmap_bsa = conv3x3_same(
        fmap_nhwc, params["conv_w"],
        params["conv_b"] + params["bel"][0]).reshape(B, S, A)

    # transpose attention operand so the padded spatial axis sits on lanes; keep fmap as
    # (B, S_pad, C) for the glimpse matmul.  Both stay f32 (no per-step dtype churn).
    efmap_bas = jnp.transpose(efmap_bsa, (0, 2, 1))                      # (B, A, S)
    if S_pad != S:
        efmap_bas = jnp.pad(efmap_bas, ((0, 0), (0, 0), (0, S_pad - S)))
        fmap_bsc = jnp.pad(fmap_bsc, ((0, 0), (0, S_pad - S), (0, 0)))
    efmap_bas = efmap_bas.astype(jnp.float32)
    fmap_bsc = fmap_bsc.astype(jnp.float32)

    # teacher forcing: step 0 uses label 0 (GO), steps 1..max_length use target.
    labels = jnp.concatenate(
        [jnp.zeros((B, 1), dtype=target.dtype), target[:, :max_length]], axis=1)
    emb_t = jnp.transpose(jnp.take(params["embedding"], labels, axis=0),
                          (1, 0, 2))                                     # (T, B, E)

    # input->hidden half of LSTM layer 1 is state independent; it is tiny, so plain XLA.
    xg1 = (emb_t.reshape(T * B, E) @ params["wih1"]
           + params["b1"]).reshape(T, B, 4 * D).astype(jnp.float32)

    # final FC weights padded to Kout lanes; identity block appended to Wfc_g copies the
    # glimpse into lanes [Kout-C:Kout] of the same 128-wide output row (free on the MXU).
    wfch = jnp.zeros((D, Kout), jnp.float32).at[:, :K].set(params["wfc_h"])
    wfcg = jnp.zeros((C, Kout), jnp.float32).at[:, :K].set(params["wfc_g"])
    wfcg = wfcg.at[:, Kout - C:].set(jnp.eye(C, dtype=jnp.float32))
    bfc = jnp.zeros((1, Kout), jnp.float32).at[:, :K].set(params["bfc"])

    # attention weights in layouts the kernel wants (built once, outside the loop).
    welT = jnp.transpose(params["wel"], (1, 0))                          # (A, D)
    wa_row = params["wa"].astype(jnp.float32)                            # (1, A)

    # initial LSTM state, batch-blockable layout: (4, B, D) = [h1, c1, h2, c2].
    state0 = jnp.stack([h0[0], c0[0], h0[1], c0[1]], axis=0)

    # optional batch-parallel grid: two blocks (one per v7x TensorCore) when every block is
    # still a multiple of 8 sublanes; otherwise a single full-batch block (v5e/v6e, demo).
    n_bb = 2 if (B % 16 == 0) else 1
    Bb = B // n_bb

    def kernel(xg1_ref, fmap_ref, efmap_ref, state_ref,
               whh1_ref, wih2_ref, whh2_ref, b2_ref, welT_ref, wa_ref,
               wfch_ref, wfcg_ref, bfc_ref,
               fused_ref, masks_ref):
        # ---------- loop-invariant hoists (computed once per kernel invocation) ----------
        welT_full = jnp.broadcast_to(welT_ref[...][None, :, :], (Bb, A, D))
        wa_b3 = jnp.broadcast_to(wa_ref[...][None, :, :], (Bb, 1, A))
        b2_full = jnp.broadcast_to(b2_ref[...], (Bb, 4 * D))
        bfc_full = jnp.broadcast_to(bfc_ref[...], (Bb, Kout))
        if S_pad != S:
            lane = lax.broadcasted_iota(jnp.int32, (1, 1, S_pad), 2)
            pad_full = jnp.broadcast_to(
                jnp.where(lane < S, 0.0, -1e30).astype(jnp.float32), (Bb, 1, S_pad))
        else:
            pad_full = None

        def step(t, carry):
            h1, c1, h2, c2 = carry

            # --- LSTM layer 1 (input half precomputed; xg1 already includes b1) ---
            g1 = xg1_ref[t] + jnp.dot(h1, whh1_ref[...],
                                      preferred_element_type=jnp.float32)
            i1 = jax.nn.sigmoid(g1[:, 0 * D:1 * D])
            f1 = jax.nn.sigmoid(g1[:, 1 * D:2 * D])
            u1 = jnp.tanh(g1[:, 2 * D:3 * D])
            o1 = jax.nn.sigmoid(g1[:, 3 * D:4 * D])
            c1n = f1 * c1 + i1 * u1
            h1n = o1 * jnp.tanh(c1n)

            # --- LSTM layer 2: split dots, no per-step lane concat ---
            g2 = (jnp.dot(h1n, wih2_ref[...], preferred_element_type=jnp.float32)
                  + jnp.dot(h2, whh2_ref[...], preferred_element_type=jnp.float32)
                  + b2_full)
            i2 = jax.nn.sigmoid(g2[:, 0 * D:1 * D])
            f2 = jax.nn.sigmoid(g2[:, 1 * D:2 * D])
            u2 = jnp.tanh(g2[:, 2 * D:3 * D])
            o2 = jax.nn.sigmoid(g2[:, 3 * D:4 * D])
            c2n = f2 * c2 + i2 * u2
            h2n = o2 * jnp.tanh(c2n)

            # --- attention: lanes = padded spatial axis, sublanes = attention dim ---
            # e_lstm in "column" layout (Bb, A, 1): sublane-broadcast + lane reduce only
            # (avoids a lane->sublane relayout of the matmul result every step).
            e_col = jnp.sum(h2n[:, None, :] * welT_full,
                            axis=-1, keepdims=True)                    # (Bb, A, 1)
            e = jnp.tanh(efmap_ref[...] + e_col)                        # (Bb, A, Sp)
            scores = jnp.einsum('bxa,bas->bxs', wa_b3, e,
                                preferred_element_type=jnp.float32)     # (Bb, 1, Sp)
            if pad_full is not None:
                scores = scores + pad_full
            m = jnp.max(scores, axis=-1, keepdims=True)
            p = jnp.exp(scores - m)
            a = p / jnp.sum(p, axis=-1, keepdims=True)                  # exact softmax
            masks_ref[t] = a[:, 0, :]

            # --- glimpse on the MXU: (Bb,1,Sp) @ (Bb,Sp,C), all f32 ---
            glimpse = jnp.einsum('bqs,bsc->bqc', a, fmap_ref[...],
                                 preferred_element_type=jnp.float32)[:, 0, :]

            # --- fused FC: logits in lanes [:K], glimpse copied into lanes [Kout-C:] ---
            fused_ref[t] = (
                jnp.dot(h2n, wfch_ref[...], preferred_element_type=jnp.float32)
                + jnp.dot(glimpse, wfcg_ref[...], preferred_element_type=jnp.float32)
                + bfc_full)

            return h1n, c1n, h2n, c2n

        lax.fori_loop(0, T, step,
                      (state_ref[0], state_ref[1], state_ref[2], state_ref[3]),
                      unroll=True)

    fused_t, masks_t = pl.pallas_call(
        kernel,
        out_shape=(
            jax.ShapeDtypeStruct((T, B, Kout), jnp.float32),
            jax.ShapeDtypeStruct((T, B, S_pad), jnp.float32),
        ),
        grid_spec=pltpu.PrefetchScalarGridSpec(
            num_scalar_prefetch=0,
            grid=(n_bb,),
            in_specs=[
                pl.BlockSpec((T, Bb, 4 * D), lambda i: (0, i, 0)),   # xg1
                pl.BlockSpec((Bb, S_pad, C), lambda i: (i, 0, 0)),   # fmap (glimpse layout)
                pl.BlockSpec((Bb, A, S_pad), lambda i: (i, 0, 0)),   # efmap (attn layout)
                pl.BlockSpec((4, Bb, D), lambda i: (0, i, 0)),       # [h1,c1,h2,c2]
                pl.BlockSpec((D, 4 * D), lambda i: (0, 0)),          # whh1
                pl.BlockSpec((D, 4 * D), lambda i: (0, 0)),          # wih2
                pl.BlockSpec((D, 4 * D), lambda i: (0, 0)),          # whh2
                pl.BlockSpec((1, 4 * D), lambda i: (0, 0)),          # b2
                pl.BlockSpec((A, D), lambda i: (0, 0)),              # wel^T
                pl.BlockSpec((1, A), lambda i: (0, 0)),              # wa
                pl.BlockSpec((D, Kout), lambda i: (0, 0)),           # wfc_h (padded)
                pl.BlockSpec((C, Kout), lambda i: (0, 0)),           # wfc_g (+ identity)
                pl.BlockSpec((1, Kout), lambda i: (0, 0)),           # bfc (padded)
            ],
            out_specs=[
                pl.BlockSpec((T, Bb, Kout), lambda i: (0, i, 0)),
                pl.BlockSpec((T, Bb, S_pad), lambda i: (0, i, 0)),
            ],
        ),
        compiler_params=pltpu.CompilerParams(
            dimension_semantics=("parallel",)),
    )(xg1, fmap_bsc, efmap_bas, state0,
      params["whh1"], params["wih2"], params["whh2"], params["b2"],
      welT, wa_row, wfch, wfcg, bfc)

    fused = jnp.transpose(fused_t, (1, 0, 2))                          # (B, T, Kout)
    logits = fused[:, :, :K]
    glimpses = fused[:, :, Kout - C:]
    masks = jnp.transpose(masks_t, (1, 0, 2))[:, :, :S].reshape(B, T, H, W)
    return logits, masks, glimpses


# ------------------------- pure-JAX reference -------------------------

def decoder_forward_ref(params, fmap_nchw, h0, c0, target, max_length):
    B, C, H, W = fmap_nchw.shape
    S = H * W
    D = h0.shape[-1]
    fmap_nhwc = jnp.transpose(fmap_nchw, (0, 2, 3, 1))
    fmap_bsc = fmap_nhwc.reshape(B, S, C)
    efmap = jax.lax.conv_general_dilated(
        fmap_nhwc, params["conv_w"], window_strides=(1, 1), padding="SAME",
        dimension_numbers=("NHWC", "HWIO", "NHWC")) + params["conv_b"]
    efmap = efmap.reshape(B, S, -1)

    def lstm_cell(x, h, c, wih, whh, b):
        gates = x @ wih + h @ whh + b
        i = jax.nn.sigmoid(gates[:, :D])
        f = jax.nn.sigmoid(gates[:, D:2 * D])
        g = jnp.tanh(gates[:, 2 * D:3 * D])
        o = jax.nn.sigmoid(gates[:, 3 * D:])
        c_new = f * c + i * g
        return o * jnp.tanh(c_new), c_new

    labels = jnp.concatenate(
        [jnp.zeros((B, 1), dtype=target.dtype), target[:, :max_length]], axis=1)
    emb = jnp.take(params["embedding"], labels, axis=0)
    h1, h2, c1, c2 = h0[0], h0[1], c0[0], c0[1]
    logits, masks, glimpses = [], [], []
    for t in range(max_length + 1):
        x = emb[:, t, :]
        h1, c1 = lstm_cell(x, h1, c1, params["wih1"], params["whh1"], params["b1"])
        h2, c2 = lstm_cell(h1, h2, c2, params["wih2"], params["whh2"], params["b2"])
        e_lstm = h2 @ params["wel"] + params["bel"]
        e = jnp.tanh(efmap + e_lstm[:, None, :])
        a_logits = jnp.sum(e * params["wa"][None, :, :], axis=-1) + params["ba"]
        m = jnp.max(a_logits, axis=-1, keepdims=True)
        p = jnp.exp(a_logits - m)
        a = p / jnp.sum(p, axis=-1, keepdims=True)
        glimpse = jnp.sum(fmap_bsc * a[:, :, None], axis=1)
        logit = h2 @ params["wfc_h"] + glimpse @ params["wfc_g"] + params["bfc"]
        logits.append(logit)
        masks.append(a)
        glimpses.append(glimpse)
    T = max_length + 1
    return (jnp.stack(logits, axis=1),
            jnp.stack(masks, axis=1).reshape(B, T, H, W),
            jnp.stack(glimpses, axis=1))


# ------------------------- setup -------------------------

def init_params(key, *, num_classes, fmap_dim, enc_dim, dec_dim, attn_dim):
    K = num_classes + 2
    ks = jax.random.split(key, 16)
    r = lambda k, shape, s=0.1: s * jax.random.normal(k, shape, dtype=jnp.float32)
    return {
        "embedding": r(ks[0], (num_classes + 1, enc_dim)),
        "wih1": r(ks[1], (enc_dim, 4 * dec_dim)),
        "whh1": r(ks[2], (dec_dim, 4 * dec_dim)),
        "b1":   r(ks[3], (1, 4 * dec_dim)),          # b_ih + b_hh combined
        "wih2": r(ks[4], (dec_dim, 4 * dec_dim)),
        "whh2": r(ks[5], (dec_dim, 4 * dec_dim)),
        "b2":   r(ks[6], (1, 4 * dec_dim)),
        "conv_w": r(ks[7], (3, 3, fmap_dim, attn_dim)),   # HWIO (e_Fmap_conv)
        "conv_b": r(ks[8], (attn_dim,)),
        "wel":  r(ks[9], (dec_dim, attn_dim)),        # e_lstm_conv (1x1 == linear)
        "bel":  r(ks[10], (1, attn_dim)),
        "wa":   r(ks[11], (1, attn_dim)),             # a_conv (attn_dim -> 1)
        "ba":   r(ks[12], (1, 1)),                    # softmax no-op; kept for the reference
        "wfc_h": r(ks[13], (dec_dim, K)),             # fc, split for [output|glimpse]
        "wfc_g": r(ks[14], (fmap_dim, K)),
        "bfc":  r(ks[15], (1, K)),
    }


if __name__ == "__main__":
    B, H, W = 2, 8, 8
    num_classes, fmap_dim, enc_dim, dec_dim, attn_dim, max_length = 10, 32, 16, 32, 32, 7

    key = jax.random.PRNGKey(0)
    k_p, k_f, k_h, k_c, k_t = jax.random.split(key, 5)
    params = init_params(k_p, num_classes=num_classes, fmap_dim=fmap_dim,
                         enc_dim=enc_dim, dec_dim=dec_dim, attn_dim=attn_dim)

    feature_map = jax.random.normal(k_f, (B, fmap_dim, H, W), dtype=jnp.float32)  # NCHW
    h0 = 0.1 * jax.random.normal(k_h, (2, B, dec_dim), dtype=jnp.float32)  # holistic h
    c0 = 0.1 * jax.random.normal(k_c, (2, B, dec_dim), dtype=jnp.float32)  # holistic c
    target = jax.random.randint(k_t, (B, max_length), 1, num_classes + 1, dtype=jnp.int32)

    logits, masks, glimpses = decoder_forward(params, feature_map, h0, c0,
                                              target, max_length)
    jax.block_until_ready((logits, masks, glimpses))

    ref = decoder_forward_ref(params, feature_map, h0, c0, target, max_length)
    # tolerances sized for the bf16-input im2col conv GEMM (f32 accumulation); the
    # sequential decode itself is pure f32 with an exact softmax.
    tols = {"logits": 1e-2, "masks": 1e-2, "glimpses": 1e-2}
    for name, got, want in zip(("logits", "masks", "glimpses"),
                               (logits, masks, glimpses), ref):
        assert got.shape == want.shape, (name, got.shape, want.shape)
        err = float(jnp.max(jnp.abs(got - want)))
        assert err < tols[name], (name, err, tols[name])

    print("KERNEL_OK")
</pallas_src>

<mosaic_0001>
module attributes {stable_mosaic.version = 11 : i64} {
  func.func @_matmul_bias_kernel(%arg0: i32, %arg1: memref<128x288xbf16, #tpu.memory_space<vmem>>, %arg2: memref<288x32xbf16, #tpu.memory_space<vmem>>, %arg3: memref<1x32xf32, #tpu.memory_space<vmem>>, %arg4: memref<128x32xf32, #tpu.memory_space<vmem>>) attributes {dimension_semantics = [#tpu.dimension_semantics<parallel>], iteration_bounds = array<i64: 1>, scalar_prefetch = 0 : i64, scratch_operands = 0 : i64, tpu.core_type = #tpu.core_type<tc>, window_params = [{transform_indices = @transform_0, window_bounds = array<i64: 128, 288>}, {pipeline_mode = #tpu.pipeline_mode<synchronous>, transform_indices = @transform_1, window_bounds = array<i64: 288, 32>}, {pipeline_mode = #tpu.pipeline_mode<synchronous>, transform_indices = @transform_2, window_bounds = array<i64: 1, 32>}, {transform_indices = @transform_3, window_bounds = array<i64: 128, 32>}]} {
    %c0 = arith.constant 0 : index
    %c0_0 = arith.constant 0 : index
    %0 = vector.load %arg1[%c0, %c0_0] : memref<128x288xbf16, #tpu.memory_space<vmem>>, vector<128x288xbf16>
    %c0_1 = arith.constant 0 : index
    %c0_2 = arith.constant 0 : index
    %1 = vector.load %arg2[%c0_1, %c0_2] : memref<288x32xbf16, #tpu.memory_space<vmem>>, vector<288x32xbf16>
    %cst = arith.constant dense<0.000000e+00> : vector<128x32xf32>
    %2 = tpu.matmul %0, %1, %cst {dimension_numbers = #tpu.dot_dimension_numbers<[1], [0], [0], [1], [0, 0, 1, 1], [], []>} : vector<128x288xbf16>, vector<288x32xbf16>, vector<128x32xf32> -> vector<128x32xf32>
    %c0_3 = arith.constant 0 : index
    %c0_4 = arith.constant 0 : index
    %3 = vector.load %arg3[%c0_3, %c0_4] : memref<1x32xf32, #tpu.memory_space<vmem>>, vector<1x32xf32>
    %4 = vector.broadcast %3 : vector<1x32xf32> to vector<128x32xf32>
    %5 = arith.addf %2, %4 : vector<128x32xf32>
    %c0_5 = arith.constant 0 : index
    %c0_6 = arith.constant 0 : index
    %6 = vector.load %arg4[%c0_5, %c0_6] : memref<128x32xf32, #tpu.memory_space<vmem>>, vector<128x32xf32>
    tpu.vector_store %arg4[%c0_5, %c0_6], %5 {strides = array<i32>} : memref<128x32xf32, #tpu.memory_space<vmem>>, vector<128x32xf32>,
    return
  }
  func.func @transform_0(%arg0: i32) -> (i32, i32) {
    %c0_i32 = arith.constant 0 : i32
    %c0_i32_0 = arith.constant 0 : i32
    return %arg0, %c0_i32 : i32, i32
  }
  func.func @transform_1(%arg0: i32) -> (i32, i32) {
    %c0_i32 = arith.constant 0 : i32
    %c0_i32_0 = arith.constant 0 : i32
    %c0_i32_1 = arith.constant 0 : i32
    return %c0_i32, %c0_i32_0 : i32, i32
  }
  func.func @transform_2(%arg0: i32) -> (i32, i32) {
    %c0_i32 = arith.constant 0 : i32
    %c0_i32_0 = arith.constant 0 : i32
    %c0_i32_1 = arith.constant 0 : i32
    return %c0_i32, %c0_i32_0 : i32, i32
  }
  func.func @transform_3(%arg0: i32) -> (i32, i32) {
    %c0_i32 = arith.constant 0 : i32
    %c0_i32_0 = arith.constant 0 : i32
    return %arg0, %c0_i32 : i32, i32
  }
}

</mosaic_0001>

<llo_original>
// kernel: tpu_custom_call.1
$region0: #{tpu_custom_call.1}
  #allocation0 [shape = 'u32[]', space=smem, size = 0x4, offset = 0x4, fixed_abs, tag = 'smem constant byte address 0x4 - core index']
  #allocation1 [shape = 'u32[72,128]{1,0:T(1,128)}', space=vmem, size = 0x9000, scoped, tag = 'internal scratch']
  %s0 = inlined_call_operand.vmem [shape: bf16[128,288], index: 0, kind: input, shape index: {}]
  %s1 = inlined_call_operand.vmem [shape: bf16[288,32], index: 1, kind: input, shape index: {}]
  %s2 = inlined_call_operand.vmem [shape: f32[1,32], index: 2, kind: input, shape index: {}]
  %s3 = inlined_call_operand.vmem [shape: f32[128,32], index: 3, kind: output, shape index: {}]
  %s4 = sld [smem:[#allocation0]]
  $region22: #{tpu_custom_call.1} parent=0
    _
  %s6 = ssub.s32 1, %s4
  %s7 = scalar_select 0, %s6, %s4
  // Predicated region
  $region2: #{tpu_custom_call.1} parent=0 // pred_check
    _
  $region3: #{tpu_custom_call.1} parent=0 // pred_check_branch
    %9 = sbr.rel (0) target = $region5
  $region4: #{tpu_custom_call.1} parent=0 // pred_region
    _
  $region5: #{tpu_custom_call.1} parent=0 // pred_fallthru
    _
  // Predicated region
  $region6: #{tpu_custom_call.1} parent=0 // pred_check
    _
  $region7: #{tpu_custom_call.1} parent=0 // pred_check_branch
    %11 = sbr.rel (0) target = $region9
  $region8: #{tpu_custom_call.1} parent=0 // pred_region
    _
  $region9: #{tpu_custom_call.1} parent=0 // pred_fallthru
    _
  // Predicated region
  $region10: #{tpu_custom_call.1} parent=0 // pred_check
    _
  $region11: #{tpu_custom_call.1} parent=0 // pred_check_branch
    %13 = sbr.rel (0) target = $region13
  $region12: #{tpu_custom_call.1} parent=0 // pred_region
    _
  $region13: #{tpu_custom_call.1} parent=0 // pred_fallthru
    _
  %v15 = vld [vmem:[%s0] sm:$0xff]
  %v16 = vld [vmem:[%s0 + $0x8] sm:$0xf]
  %v17 = vld [vmem:[%s0 + $0xc] sm:$0xff]
  %v18 = vld [vmem:[%s0 + $0x14] sm:$0xf]
  %v19 = vld [vmem:[%s0 + $0x18] sm:$0xff]
  %v20 = vld [vmem:[%s0 + $0x20] sm:$0xf]
  %v21 = vld [vmem:[%s0 + $0x24] sm:$0xff]
  %v22 = vld [vmem:[%s0 + $0x2c] sm:$0xf]
  %v23 = vld [vmem:[%s0 + $0x30] sm:$0xff]
  %v24 = vld [vmem:[%s0 + $0x38] sm:$0xf]
  %v25 = vld [vmem:[%s0 + $0x3c] sm:$0xff]
  %v26 = vld [vmem:[%s0 + $0x44] sm:$0xf]
  %v27 = vld [vmem:[%s0 + $0x48] sm:$0xff]
  %v28 = vld [vmem:[%s0 + $0x50] sm:$0xf]
  %v29 = vld [vmem:[%s0 + $0x54] sm:$0xff]
  %v30 = vld [vmem:[%s0 + $0x5c] sm:$0xf]
  %v31 = vld [vmem:[%s0 + $0x60] sm:$0xff]
  %v32 = vld [vmem:[%s0 + $0x68] sm:$0xf]
  %v33 = vld [vmem:[%s0 + $0x6c] sm:$0xff]
  %v34 = vld [vmem:[%s0 + $0x74] sm:$0xf]
  %v35 = vld [vmem:[%s0 + $0x78] sm:$0xff]
  %v36 = vld [vmem:[%s0 + $0x80] sm:$0xf]
  %v37 = vld [vmem:[%s0 + $0x84] sm:$0xff]
  %v38 = vld [vmem:[%s0 + $0x8c] sm:$0xf]
  %v39 = vld [vmem:[%s0 + $0x90] sm:$0xff]
  %v40 = vld [vmem:[%s0 + $0x98] sm:$0xf]
  %v41 = vld [vmem:[%s0 + $0x9c] sm:$0xff]
  %v42 = vld [vmem:[%s0 + $0xa4] sm:$0xf]
  %v43 = vld [vmem:[%s0 + $0xa8] sm:$0xff]
  %v44 = vld [vmem:[%s0 + $0xb0] sm:$0xf]
  %v45 = vld [vmem:[%s0 + $0xb4] sm:$0xff]
  %v46 = vld [vmem:[%s0 + $0xbc] sm:$0xf]
  %v47 = vld [vmem:[%s1] sm:$0xf]
  %v48 = vld [vmem:[%s1 + $0x4] sm:$0xf]
  %v49 = vld [vmem:[%s1 + $0x8] sm:$0xf]
  %v50 = vld [vmem:[%s1 + $0xc] sm:$0xf]
  %v51 = vld [vmem:[%s1 + $0x10] sm:$0xf]
  %v52 = vld [vmem:[%s1 + $0x14] sm:$0xf]
  %v53 = vld [vmem:[%s1 + $0x18] sm:$0xf]
  %v54 = vld [vmem:[%s1 + $0x1c] sm:$0xf]
  %v55 = vld [vmem:[%s1 + $0x20] sm:$0xf]
  %v56 = vld [vmem:[%s1 + $0x24] sm:$0xf]
  %v57 = vld [vmem:[%s1 + $0x28] sm:$0xf]
  %v58 = vld [vmem:[%s1 + $0x2c] sm:$0xf]
  %v59 = vld [vmem:[%s1 + $0x30] sm:$0xf]
  %v60 = vld [vmem:[%s1 + $0x34] sm:$0xf]
  %v61 = vld [vmem:[%s1 + $0x38] sm:$0xf]
  %v62 = vld [vmem:[%s1 + $0x3c] sm:$0xf]
  %v63 = vld [vmem:[%s1 + $0x40] sm:$0xf]
  %v64 = vld [vmem:[%s1 + $0x44] sm:$0xf]
  %v65 = vld [vmem:[%s1 + $0x48] sm:$0xf]
  %v66 = vld [vmem:[%s1 + $0x4c] sm:$0xf]
  %v67 = vld [vmem:[%s1 + $0x50] sm:$0xf]
  %v68 = vld [vmem:[%s1 + $0x54] sm:$0xf]
  %v69 = vld [vmem:[%s1 + $0x58] sm:$0xf]
  %v70 = vld [vmem:[%s1 + $0x5c] sm:$0xf]
  %v71 = vld [vmem:[%s1 + $0x60] sm:$0xf]
  %v72 = vld [vmem:[%s1 + $0x64] sm:$0xf]
  %v73 = vld [vmem:[%s1 + $0x68] sm:$0xf]
  %v74 = vld [vmem:[%s1 + $0x6c] sm:$0xf]
  %v75 = vld [vmem:[%s1 + $0x70] sm:$0xf]
  %v76 = vld [vmem:[%s1 + $0x74] sm:$0xf]
  %v77 = vld [vmem:[%s1 + $0x78] sm:$0xf]
  %v78 = vld [vmem:[%s1 + $0x7c] sm:$0xf]
  %v79 = vld [vmem:[%s1 + $0x80] sm:$0xf]
  %v80 = vld [vmem:[%s1 + $0x84] sm:$0xf]
  %v81 = vld [vmem:[%s1 + $0x88] sm:$0xf]
  %v82 = vld [vmem:[%s1 + $0x8c] sm:$0xf]
  %v83 = vld [vmem:[%s2] sm:$0x1]
  %v85 = vperm.slane %v83, 0
  %v119 = vunpack.c.l.b16 %v15
  %v120 = vunpack.c.h.b16 %v15
  %v121 = vunpack.c.l.b16 %v16
  %v122 = vunpack.c.l.b16 %v17
  %v123 = vunpack.c.h.b16 %v17
  %v124 = vunpack.c.l.b16 %v18
  %v125 = vunpack.c.l.b16 %v19
  %v126 = vunpack.c.h.b16 %v19
  %v127 = vunpack.c.l.b16 %v20
  %v128 = vunpack.c.l.b16 %v21
  %v129 = vunpack.c.h.b16 %v21
  %v130 = vunpack.c.l.b16 %v22
  %v131 = vunpack.c.l.b16 %v23
  %v132 = vunpack.c.h.b16 %v23
  %v133 = vunpack.c.l.b16 %v24
  %v134 = vunpack.c.l.b16 %v25
  %v135 = vunpack.c.h.b16 %v25
  %v136 = vunpack.c.l.b16 %v26
  %v137 = vunpack.c.l.b16 %v27
  %v138 = vunpack.c.h.b16 %v27
  %v139 = vunpack.c.l.b16 %v28
  %v140 = vunpack.c.l.b16 %v29
  %v141 = vunpack.c.h.b16 %v29
  %v142 = vunpack.c.l.b16 %v30
  %v143 = vunpack.c.l.b16 %v31
  %v144 = vunpack.c.h.b16 %v31
  %v145 = vunpack.c.l.b16 %v32
  %v146 = vunpack.c.l.b16 %v33
  %v147 = vunpack.c.h.b16 %v33
  %v148 = vunpack.c.l.b16 %v34
  %v149 = vunpack.c.l.b16 %v35
  %v150 = vunpack.c.h.b16 %v35
  %v151 = vunpack.c.l.b16 %v36
  %v152 = vunpack.c.l.b16 %v37
  %v153 = vunpack.c.h.b16 %v37
  %v154 = vunpack.c.l.b16 %v38
  %v155 = vunpack.c.l.b16 %v39
  %v156 = vunpack.c.h.b16 %v39
  %v157 = vunpack.c.l.b16 %v40
  %v158 = vunpack.c.l.b16 %v41
  %v159 = vunpack.c.h.b16 %v41
  %v160 = vunpack.c.l.b16 %v42
  %v161 = vunpack.c.l.b16 %v43
  %v162 = vunpack.c.h.b16 %v43
  %v163 = vunpack.c.l.b16 %v44
  %v164 = vunpack.c.l.b16 %v45
  %v165 = vunpack.c.h.b16 %v45
  %v166 = vunpack.c.l.b16 %v46
  %v167 = vpack.c.b16 %v122, %v119
  %v168 = vpack.c.b16 %v123, %v120
  %v169 = vpack.c.b16 %v124, %v121
  %v170 = vpack.c.b16 %v128, %v125
  %v171 = vpack.c.b16 %v129, %v126
  %v172 = vpack.c.b16 %v130, %v127
  %v173 = vpack.c.b16 %v134, %v131
  %v174 = vpack.c.b16 %v135, %v132
  %v175 = vpack.c.b16 %v136, %v133
  %v176 = vpack.c.b16 %v140, %v137
  %v177 = vpack.c.b16 %v141, %v138
  %v178 = vpack.c.b16 %v142, %v139
  %v179 = vpack.c.b16 %v146, %v143
  %v180 = vpack.c.b16 %v147, %v144
  %v181 = vpack.c.b16 %v148, %v145
  %v182 = vpack.c.b16 %v152, %v149
  %v183 = vpack.c.b16 %v153, %v150
  %v184 = vpack.c.b16 %v154, %v151
  %v185 = vpack.c.b16 %v158, %v155
  %v186 = vpack.c.b16 %v159, %v156
  %v187 = vpack.c.b16 %v160, %v157
  %v188 = vpack.c.b16 %v164, %v161
  %v189 = vpack.c.b16 %v165, %v162
  %v190 = vpack.c.b16 %v166, %v163
  %v243 = vunpack.c.l.b16 %v47
  %v244 = vunpack.c.l.b16 %v48
  %v245 = vunpack.c.l.b16 %v49
  %v246 = vunpack.c.l.b16 %v50
  %v247 = vunpack.c.l.b16 %v51
  %v248 = vunpack.c.l.b16 %v52
  %v249 = vunpack.c.l.b16 %v53
  %v250 = vunpack.c.l.b16 %v54
  %v251 = vunpack.c.l.b16 %v55
  %v252 = vunpack.c.l.b16 %v56
  %v253 = vunpack.c.l.b16 %v57
  %v254 = vunpack.c.l.b16 %v58
  %v255 = vunpack.c.l.b16 %v59
  %v256 = vunpack.c.l.b16 %v60
  %v257 = vunpack.c.l.b16 %v61
  %v258 = vunpack.c.l.b16 %v62
  %v259 = vunpack.c.l.b16 %v63
  %v260 = vunpack.c.l.b16 %v64
  %v261 = vunpack.c.l.b16 %v65
  %v262 = vunpack.c.l.b16 %v66
  %v263 = vunpack.c.l.b16 %v67
  %v264 = vunpack.c.l.b16 %v68
  %v265 = vunpack.c.l.b16 %v69
  %v266 = vunpack.c.l.b16 %v70
  %v267 = vunpack.c.l.b16 %v71
  %v268 = vunpack.c.l.b16 %v72
  %v269 = vunpack.c.l.b16 %v73
  %v270 = vunpack.c.l.b16 %v74
  %v271 = vunpack.c.l.b16 %v75
  %v272 = vunpack.c.l.b16 %v76
  %v273 = vunpack.c.l.b16 %v77
  %v274 = vunpack.c.l.b16 %v78
  %v275 = vunpack.c.l.b16 %v79
  %v276 = vunpack.c.l.b16 %v80
  %v277 = vunpack.c.l.b16 %v81
  %v278 = vunpack.c.l.b16 %v82
  %v279 = vpack.c.b16 %v244, %v243
  %v280 = vpack.c.b16 %v246, %v245
  %v281 = vpack.c.b16 %v248, %v247
  %v282 = vpack.c.b16 %v250, %v249
  %v283 = vpack.c.b16 %v252, %v251
  %v284 = vpack.c.b16 %v254, %v253
  %v285 = vpack.c.b16 %v256, %v255
  %v286 = vpack.c.b16 %v258, %v257
  %v287 = vpack.c.b16 %v260, %v259
  %v288 = vpack.c.b16 %v262, %v261
  %v289 = vpack.c.b16 %v264, %v263
  %v290 = vpack.c.b16 %v266, %v265
  %v291 = vpack.c.b16 %v268, %v267
  %v292 = vpack.c.b16 %v270, %v269
  %v293 = vpack.c.b16 %v272, %v271
  %v294 = vpack.c.b16 %v274, %v273
  %v295 = vpack.c.b16 %v276, %v275
  %v296 = vpack.c.b16 %v278, %v277
  %vm315 = vcmask 261120
  %v317 = vsel %vm315, %v169, 0
  %v320 = vsel %vm315, %v172, 0
  %v323 = vsel %vm315, %v175, 0
  %v326 = vsel %vm315, %v178, 0
  %v329 = vsel %vm315, %v181, 0
  %v332 = vsel %vm315, %v184, 0
  %v335 = vsel %vm315, %v187, 0
  %v338 = vsel %vm315, %v190, 0
  %340 = vmatpush.bf16.msra.mxu0 %v286
  %341 = vmatpush.bf16.msra.mxu0 %v285
  %342 = vmatpush.bf16.msra.mxu0 %v284
  %343 = vmatpush.bf16.msra.mxu0 %v283
  %344 = vmatpush.bf16.msra.mxu0 %v282
  %345 = vmatpush.bf16.msra.mxu0 %v281
  %346 = vmatpush.bf16.msra.mxu0 %v280
  %347 = vmatpush.bf16.msra.mxu0 %v279
  %348 = vmatmul.bf16.gmra.mxu0 %v167
  %v349 = vpop.f32.mrf.mxu0
  %v350 = vadd.f32 %v85, %v349
  %v351 = vpop.f32.mrf.mxu0
  %v352 = vadd.f32 %v85, %v351
  %353 = vmatmul.bf16.gmra.mxu0 %v170
  %v354 = vpop.f32.mrf.mxu0
  %v355 = vadd.f32 %v85, %v354
  %v356 = vpop.f32.mrf.mxu0
  %v357 = vadd.f32 %v85, %v356
  %358 = vmatmul.bf16.gmra.mxu0 %v173
  %v359 = vpop.f32.mrf.mxu0
  %v360 = vadd.f32 %v85, %v359
  %v361 = vpop.f32.mrf.mxu0
  %v362 = vadd.f32 %v85, %v361
  %363 = vmatmul.bf16.gmra.mxu0 %v176
  %v364 = vpop.f32.mrf.mxu0
  %v365 = vadd.f32 %v85, %v364
  %v366 = vpop.f32.mrf.mxu0
  %v367 = vadd.f32 %v85, %v366
  %368 = vmatmul.bf16.gmra.mxu0 %v179
  %v369 = vpop.f32.mrf.mxu0
  %v370 = vadd.f32 %v85, %v369
  %v371 = vpop.f32.mrf.mxu0
  %v372 = vadd.f32 %v85, %v371
  %373 = vmatmul.bf16.gmra.mxu0 %v182
  %v374 = vpop.f32.mrf.mxu0
  %v375 = vadd.f32 %v85, %v374
  %v376 = vpop.f32.mrf.mxu0
  %v377 = vadd.f32 %v85, %v376
  %378 = vmatmul.bf16.gmra.mxu0 %v185
  %v379 = vpop.f32.mrf.mxu0
  %v380 = vadd.f32 %v85, %v379
  %v381 = vpop.f32.mrf.mxu0
  %v382 = vadd.f32 %v85, %v381
  %383 = vmatmul.bf16.gmra.mxu0 %v188
  %v384 = vpop.f32.mrf.mxu0
  %v385 = vadd.f32 %v85, %v384
  %v386 = vpop.f32.mrf.mxu0
  %v387 = vadd.f32 %v85, %v386
  %388 = vdwg.mxu0
  %389 = vmatpush.bf16.msra.mxu0 %v294
  %390 = vmatpush.bf16.msra.mxu0 %v293
  %391 = vmatpush.bf16.msra.mxu0 %v292
  %392 = vmatpush.bf16.msra.mxu0 %v291
  %393 = vmatpush.bf16.msra.mxu0 %v290
  %394 = vmatpush.bf16.msra.mxu0 %v289
  %395 = vmatpush.bf16.msra.mxu0 %v288
  %396 = vmatpush.bf16.msra.mxu0 %v287
  %397 = vmatmul.bf16.gmra.mxu0 %v168
  %v398 = vpop.f32.mrf.mxu0
  %v399 = vadd.f32 %v350, %v398
  %v400 = vpop.f32.mrf.mxu0
  %v401 = vadd.f32 %v352, %v400
  %402 = vmatmul.bf16.gmra.mxu0 %v171
  %v403 = vpop.f32.mrf.mxu0
  %v404 = vadd.f32 %v355, %v403
  %v405 = vpop.f32.mrf.mxu0
  %v406 = vadd.f32 %v357, %v405
  %407 = vmatmul.bf16.gmra.mxu0 %v174
  %v408 = vpop.f32.mrf.mxu0
  %v409 = vadd.f32 %v360, %v408
  %v410 = vpop.f32.mrf.mxu0
  %v411 = vadd.f32 %v362, %v410
  %412 = vmatmul.bf16.gmra.mxu0 %v177
  %v413 = vpop.f32.mrf.mxu0
  %v414 = vadd.f32 %v365, %v413
  %v415 = vpop.f32.mrf.mxu0
  %v416 = vadd.f32 %v367, %v415
  %417 = vmatmul.bf16.gmra.mxu0 %v180
  %v418 = vpop.f32.mrf.mxu0
  %v419 = vadd.f32 %v370, %v418
  %v420 = vpop.f32.mrf.mxu0
  %v421 = vadd.f32 %v372, %v420
  %422 = vmatmul.bf16.gmra.mxu0 %v183
  %v423 = vpop.f32.mrf.mxu0
  %v424 = vadd.f32 %v375, %v423
  %v425 = vpop.f32.mrf.mxu0
  %v426 = vadd.f32 %v377, %v425
  %427 = vmatmul.bf16.gmra.mxu0 %v186
  %v428 = vpop.f32.mrf.mxu0
  %v429 = vadd.f32 %v380, %v428
  %v430 = vpop.f32.mrf.mxu0
  %v431 = vadd.f32 %v382, %v430
  %432 = vmatmul.bf16.gmra.mxu0 %v189
  %v433 = vpop.f32.mrf.mxu0
  %v434 = vadd.f32 %v385, %v433
  %v435 = vpop.f32.mrf.mxu0
  %v436 = vadd.f32 %v387, %v435
  %437 = vdwg.mxu0
  %438 = vmatpush.bf16.msra.mxu0 0
  %439 = vmatpush.bf16.msra.mxu0 0
  %440 = vmatpush.bf16.msra.mxu0 0
  %441 = vmatpush.bf16.msra.mxu0 0
  %442 = vmatpush.bf16.msra.mxu0 0
  %443 = vmatpush.bf16.msra.mxu0 0
  %444 = vmatpush.bf16.msra.mxu0 %v296
  %445 = vmatpush.bf16.msra.mxu0 %v295
  %446 = vmatmul.bf16.gmra.mxu0 %v317
  %v447 = vpop.f32.mrf.mxu0
  %v448 = vadd.f32 %v399, %v447
  %v449 = vpop.f32.mrf.mxu0
  %v450 = vadd.f32 %v401, %v449
  %451 = vmatmul.bf16.gmra.mxu0 %v320
  %v452 = vpop.f32.mrf.mxu0
  %v453 = vadd.f32 %v404, %v452
  %v454 = vpop.f32.mrf.mxu0
  %v455 = vadd.f32 %v406, %v454
  %456 = vmatmul.bf16.gmra.mxu0 %v323
  %v457 = vpop.f32.mrf.mxu0
  %v458 = vadd.f32 %v409, %v457
  %v459 = vpop.f32.mrf.mxu0
  %v460 = vadd.f32 %v411, %v459
  %461 = vmatmul.bf16.gmra.mxu0 %v326
  %v462 = vpop.f32.mrf.mxu0
  %v463 = vadd.f32 %v414, %v462
  %v464 = vpop.f32.mrf.mxu0
  %v465 = vadd.f32 %v416, %v464
  %466 = vmatmul.bf16.gmra.mxu0 %v329
  %v467 = vpop.f32.mrf.mxu0
  %v468 = vadd.f32 %v419, %v467
  %v469 = vpop.f32.mrf.mxu0
  %v470 = vadd.f32 %v421, %v469
  %471 = vmatmul.bf16.gmra.mxu0 %v332
  %v472 = vpop.f32.mrf.mxu0
  %v473 = vadd.f32 %v424, %v472
  %v474 = vpop.f32.mrf.mxu0
  %v475 = vadd.f32 %v426, %v474
  %476 = vmatmul.bf16.gmra.mxu0 %v335
  %v477 = vpop.f32.mrf.mxu0
  %v478 = vadd.f32 %v429, %v477
  %v479 = vpop.f32.mrf.mxu0
  %v480 = vadd.f32 %v431, %v479
  %481 = vmatmul.bf16.gmra.mxu0 %v338
  %v482 = vpop.f32.mrf.mxu0
  %v483 = vadd.f32 %v434, %v482
  %v484 = vpop.f32.mrf.mxu0
  %v485 = vadd.f32 %v436, %v484
  %486 = vdwg.mxu0
  %487 = vst.msk [vmem:[%s3] sm:$0xff] %vm315, %v448
  %488 = vst.msk [vmem:[%s3 + $0x8] sm:$0xff] %vm315, %v450
  %489 = vst.msk [vmem:[%s3 + $0x10] sm:$0xff] %vm315, %v453
  %490 = vst.msk [vmem:[%s3 + $0x18] sm:$0xff] %vm315, %v455
  %491 = vst.msk [vmem:[%s3 + $0x20] sm:$0xff] %vm315, %v458
  %492 = vst.msk [vmem:[%s3 + $0x28] sm:$0xff] %vm315, %v460
  %493 = vst.msk [vmem:[%s3 + $0x30] sm:$0xff] %vm315, %v463
  %494 = vst.msk [vmem:[%s3 + $0x38] sm:$0xff] %vm315, %v465
  %495 = vst.msk [vmem:[%s3 + $0x40] sm:$0xff] %vm315, %v468
  %496 = vst.msk [vmem:[%s3 + $0x48] sm:$0xff] %vm315, %v470
  %497 = vst.msk [vmem:[%s3 + $0x50] sm:$0xff] %vm315, %v473
  %498 = vst.msk [vmem:[%s3 + $0x58] sm:$0xff] %vm315, %v475
  %499 = vst.msk [vmem:[%s3 + $0x60] sm:$0xff] %vm315, %v478
  %500 = vst.msk [vmem:[%s3 + $0x68] sm:$0xff] %vm315, %v480
  %501 = vst.msk [vmem:[%s3 + $0x70] sm:$0xff] %vm315, %v483
  %502 = vst.msk [vmem:[%s3 + $0x78] sm:$0xff] %vm315, %v485
  // Predicated region
  $region14: #{tpu_custom_call.1} parent=0 // pred_check
    _
  $region15: #{tpu_custom_call.1} parent=0 // pred_check_branch
    %504 = sbr.rel (0) target = $region17
  $region16: #{tpu_custom_call.1} parent=0 // pred_region
    _
  $region17: #{tpu_custom_call.1} parent=0 // pred_fallthru
    _
  // Predicated region
  $region18: #{tpu_custom_call.1} parent=0 // pred_check
    _
  $region19: #{tpu_custom_call.1} parent=0 // pred_check_branch
    %506 = sbr.rel (0) target = $region21
  $region20: #{tpu_custom_call.1} parent=0 // pred_region
    _
  $region21: #{tpu_custom_call.1} parent=0 // pred_fallthru
    _

</llo_original>
